<compile_context>
chip_gen: v6e
topology: v6e:2x2x1
jax: 0.10.0
libtpu: 0.0.40
codegen_flags: <defaults>
</compile_context>

<pallas_src>
import functools
import math

import jax
import jax.numpy as jnp
from jax import lax
from jax.experimental import pallas as pl
from jax.experimental.pallas import tpu as pltpu

_SUBLANE = 8


def _round_up(n, m):
    return ((n + m - 1) // m) * m


def _gelu_erf(x):
    # PyTorch nn.GELU() default: exact erf formulation.
    return 0.5 * x * (1.0 + lax.erf(x * jnp.float32(1.0 / math.sqrt(2.0))))


def _gelu_tanh(x):
    # tanh approximation (routes through EUP instead of a long erf VALU polynomial).
    c = jnp.float32(math.sqrt(2.0 / math.pi))
    return 0.5 * x * (1.0 + jnp.tanh(c * (x + jnp.float32(0.044715) * x * x * x)))


def _dqn_kernel(x_ref, w1_ref, b1_ref, w2_ref, b2_ref, w3_ref, b3_ref, o_ref, *, approx_gelu):
    gelu = _gelu_tanh if approx_gelu else _gelu_erf
    mm_dtype = w1_ref.dtype                       # f32 or bf16 (MXU input dtype)

    x = x_ref[...].astype(mm_dtype)

    # Layer 1: Linear(obs_dim, 128) + GELU   (f32 accumulate, f32 bias/activation)
    h1 = jnp.dot(x, w1_ref[...], preferred_element_type=jnp.float32) + b1_ref[...]
    h1 = gelu(h1).astype(mm_dtype)

    # Layer 2: Linear(128, 128) + GELU
    h2 = jnp.dot(h1, w2_ref[...], preferred_element_type=jnp.float32) + b2_ref[...]
    h2 = gelu(h2).astype(mm_dtype)

    # Layer 3: Linear(128, n_actions) — only the real action columns are written.
    out = jnp.dot(h2, w3_ref[...], preferred_element_type=jnp.float32) + b3_ref[...]
    o_ref[...] = out.astype(o_ref.dtype)


def prepare_params(params, *, matmul_dtype=jnp.float32):
    """One-time parameter prep (hoisted out of the per-call path).

    Weights are stored (in, out); cast once to the MXU input dtype.  Biases stay f32 (1, out).
    """
    w1, b1, w2, b2, w3, b3 = params
    w = lambda a: jnp.asarray(a, matmul_dtype)
    b = lambda a: jnp.asarray(a, jnp.float32).reshape(1, -1)
    return (w(w1), b(b1), w(w2), b(b2), w(w3), b(b3))


def _pick_batch_tile(B, batch_tile):
    """Return (TB, B_pad) such that TB divides B_pad and blocks are layout-legal."""
    if B <= batch_tile:
        return B, B                                # single full-extent tile, no padding at all
    B_pad = _round_up(B, _SUBLANE)
    TB = _SUBLANE
    for cand in range(_SUBLANE, batch_tile + 1, _SUBLANE):
        if B_pad % cand == 0:
            TB = cand                              # largest multiple-of-8 divisor <= batch_tile
    n_tiles = B_pad // TB
    if n_tiles > 1 and n_tiles % 2 == 1 and TB % (2 * _SUBLANE) == 0:
        TB //= 2                                   # even tile count -> balanced on v7x's 2 TCs
    return TB, B_pad


def dqn_forward(x, prepared, *, batch_tile=1024, approx_gelu=True):
    """x: (B, obs_dim) f32.  prepared: output of prepare_params()."""
    w1, b1, w2, b2, w3, b3 = prepared
    B, obs_dim = x.shape
    n_actions = w3.shape[1]

    x = x.astype(jnp.float32)
    TB, B_pad = _pick_batch_tile(B, batch_tile)
    if B_pad != B:                                 # at most 7 padded rows
        x = jnp.zeros((B_pad, obs_dim), jnp.float32).at[:B].set(x)

    grid = (B_pad // TB,)

    def resident(a):                               # constant block index -> DMA'd once, stays in VMEM
        return pl.BlockSpec(a.shape, lambda i: (0, 0))

    out = pl.pallas_call(
        functools.partial(_dqn_kernel, approx_gelu=approx_gelu),
        out_shape=jax.ShapeDtypeStruct((B_pad, n_actions), jnp.float32),
        grid=grid,
        in_specs=[
            pl.BlockSpec((TB, obs_dim), lambda i: (i, 0)),   # x: tiled over batch only
            resident(w1), resident(b1),
            resident(w2), resident(b2),
            resident(w3), resident(b3),
        ],
        out_specs=pl.BlockSpec((TB, n_actions), lambda i: (i, 0)),
        compiler_params=pltpu.CompilerParams(
            dimension_semantics=("parallel",),               # lets v7x shard tiles across both TCs
        ),
    )(x, w1, b1, w2, b2, w3, b3)

    return out if B_pad == B else out[:B]


def init_params(key, obs_dim, n_actions, hidden=128):
    # Deterministic init mimicking nn.Linear default (uniform(-1/sqrt(fan_in), 1/sqrt(fan_in))).
    ks = jax.random.split(key, 6)

    def lin(kw, kb, fan_in, fan_out):
        bound = 1.0 / math.sqrt(fan_in)
        w = jax.random.uniform(kw, (fan_in, fan_out), jnp.float32, -bound, bound)
        b = jax.random.uniform(kb, (1, fan_out), jnp.float32, -bound, bound)
        return w, b

    w1, b1 = lin(ks[0], ks[1], obs_dim, hidden)
    w2, b2 = lin(ks[2], ks[3], hidden, hidden)
    w3, b3 = lin(ks[4], ks[5], hidden, n_actions)
    return (w1, b1, w2, b2, w3, b3)


def reference_forward(x, params, *, approx_gelu=True):
    w1, b1, w2, b2, w3, b3 = params
    act = lambda v: jax.nn.gelu(v, approximate=approx_gelu)
    h1 = act(x @ w1 + b1)
    h2 = act(h1 @ w2 + b2)
    return h2 @ w3 + b3


if __name__ == "__main__":
    key = jax.random.PRNGKey(0)
    k_x, k_x2, k_p = jax.random.split(key, 3)

    obs_dim = 4      # e.g. CartPole observation_space.shape[0]
    n_actions = 2    # e.g. CartPole action_space.n
    params = init_params(k_p, obs_dim, n_actions)
    prepared_f32 = prepare_params(params)                                   # default f32 matmuls
    prepared_bf16 = prepare_params(params, matmul_dtype=jnp.bfloat16)       # v6e/v7x fast path

    # 1) Small batch, single grid step, tanh GELU (default perf path).
    batch = 8
    x = jax.random.normal(k_x, (batch, obs_dim), dtype=jnp.float32)
    out = jax.block_until_ready(dqn_forward(x, prepared_f32))
    ref = reference_forward(x, params, approx_gelu=True)
    assert out.shape == (batch, n_actions)
    assert jnp.allclose(out, ref, atol=1e-4, rtol=1e-4), "mismatch (tanh GELU, small batch)"

    # 2) Exact-erf GELU path (matches PyTorch nn.GELU() default semantics).
    out_e = jax.block_until_ready(dqn_forward(x, prepared_f32, approx_gelu=False))
    ref_e = reference_forward(x, params, approx_gelu=False)
    assert jnp.allclose(out_e, ref_e, atol=1e-4, rtol=1e-4), "mismatch (exact GELU)"

    # 3) Larger non-multiple-of-8 batch with a forced small tile: exercises batch padding,
    #    divisor-based TB selection, the even-tile-count adjustment and the final row slice.
    batch2 = 1037
    x2 = jax.random.normal(k_x2, (batch2, obs_dim), dtype=jnp.float32)
    out2 = jax.block_until_ready(dqn_forward(x2, prepared_f32, batch_tile=512))
    ref2 = reference_forward(x2, params, approx_gelu=True)
    assert out2.shape == (batch2, n_actions)
    assert jnp.allclose(out2, ref2, atol=1e-4, rtol=1e-4), "mismatch (tiled batch)"

    # 4) bf16-matmul fast path (f32 accumulate + f32 GELU); looser tolerance by construction.
    out_b = jax.block_until_ready(dqn_forward(x, prepared_bf16))
    assert jnp.allclose(out_b, ref, atol=5e-2, rtol=5e-2), "mismatch (bf16 matmul path)"

    print("KERNEL_OK")
</pallas_src>

<mosaic_0001>
module attributes {stable_mosaic.version = 11 : i64} {
  func.func @_dqn_kernel(%arg0: i32, %arg1: memref<8x4xf32, #tpu.memory_space<vmem>>, %arg2: memref<4x128xf32, #tpu.memory_space<vmem>>, %arg3: memref<1x128xf32, #tpu.memory_space<vmem>>, %arg4: memref<128x128xf32, #tpu.memory_space<vmem>>, %arg5: memref<1x128xf32, #tpu.memory_space<vmem>>, %arg6: memref<128x2xf32, #tpu.memory_space<vmem>>, %arg7: memref<1x2xf32, #tpu.memory_space<vmem>>, %arg8: memref<8x2xf32, #tpu.memory_space<vmem>>) attributes {dimension_semantics = [#tpu.dimension_semantics<parallel>], iteration_bounds = array<i64: 1>, scalar_prefetch = 0 : i64, scratch_operands = 0 : i64, tpu.core_type = #tpu.core_type<tc>, window_params = [{transform_indices = @transform_0, window_bounds = array<i64: 8, 4>}, {pipeline_mode = #tpu.pipeline_mode<synchronous>, transform_indices = @transform_1, window_bounds = array<i64: 4, 128>}, {pipeline_mode = #tpu.pipeline_mode<synchronous>, transform_indices = @transform_2, window_bounds = array<i64: 1, 128>}, {pipeline_mode = #tpu.pipeline_mode<synchronous>, transform_indices = @transform_3, window_bounds = array<i64: 128, 128>}, {pipeline_mode = #tpu.pipeline_mode<synchronous>, transform_indices = @transform_4, window_bounds = array<i64: 1, 128>}, {pipeline_mode = #tpu.pipeline_mode<synchronous>, transform_indices = @transform_5, window_bounds = array<i64: 128, 2>}, {pipeline_mode = #tpu.pipeline_mode<synchronous>, transform_indices = @transform_6, window_bounds = array<i64: 1, 2>}, {transform_indices = @transform_7, window_bounds = array<i64: 8, 2>}]} {
    %c0 = arith.constant 0 : index
    %c0_0 = arith.constant 0 : index
    %0 = vector.load %arg1[%c0, %c0_0] : memref<8x4xf32, #tpu.memory_space<vmem>>, vector<8x4xf32>
    %c0_1 = arith.constant 0 : index
    %c0_2 = arith.constant 0 : index
    %1 = vector.load %arg2[%c0_1, %c0_2] : memref<4x128xf32, #tpu.memory_space<vmem>>, vector<4x128xf32>
    %cst = arith.constant dense<0.000000e+00> : vector<8x128xf32>
    %2 = tpu.matmul %0, %1, %cst {dimension_numbers = #tpu.dot_dimension_numbers<[1], [0], [0], [1], [0, 0, 1, 1], [], []>} : vector<8x4xf32>, vector<4x128xf32>, vector<8x128xf32> -> vector<8x128xf32>
    %c0_3 = arith.constant 0 : index
    %c0_4 = arith.constant 0 : index
    %3 = vector.load %arg3[%c0_3, %c0_4] : memref<1x128xf32, #tpu.memory_space<vmem>>, vector<1x128xf32>
    %4 = vector.broadcast %3 : vector<1x128xf32> to vector<8x128xf32>
    %5 = arith.addf %2, %4 : vector<8x128xf32>
    %cst_5 = arith.constant 5.000000e-01 : f32
    %6 = vector.broadcast %cst_5 : f32 to vector<8x128xf32>
    %7 = arith.mulf %6, %5 : vector<8x128xf32>
    %cst_6 = arith.constant 4.471500e-02 : f32
    %8 = vector.broadcast %cst_6 : f32 to vector<8x128xf32>
    %9 = arith.mulf %8, %5 : vector<8x128xf32>
    %10 = arith.mulf %9, %5 : vector<8x128xf32>
    %11 = arith.mulf %10, %5 : vector<8x128xf32>
    %12 = arith.addf %5, %11 : vector<8x128xf32>
    %cst_7 = arith.constant 0.797884583 : f32
    %13 = vector.broadcast %cst_7 : f32 to vector<8x128xf32>
    %14 = arith.mulf %13, %12 : vector<8x128xf32>
    %15 = math.tanh %14 : vector<8x128xf32>
    %cst_8 = arith.constant 1.000000e+00 : f32
    %16 = vector.broadcast %cst_8 : f32 to vector<8x128xf32>
    %17 = arith.addf %16, %15 : vector<8x128xf32>
    %18 = arith.mulf %7, %17 : vector<8x128xf32>
    %c0_9 = arith.constant 0 : index
    %c0_10 = arith.constant 0 : index
    %19 = vector.load %arg4[%c0_9, %c0_10] : memref<128x128xf32, #tpu.memory_space<vmem>>, vector<128x128xf32>
    %cst_11 = arith.constant dense<0.000000e+00> : vector<8x128xf32>
    %20 = tpu.matmul %18, %19, %cst_11 {dimension_numbers = #tpu.dot_dimension_numbers<[1], [0], [0], [1], [0, 0, 1, 1], [], []>} : vector<8x128xf32>, vector<128x128xf32>, vector<8x128xf32> -> vector<8x128xf32>
    %c0_12 = arith.constant 0 : index
    %c0_13 = arith.constant 0 : index
    %21 = vector.load %arg5[%c0_12, %c0_13] : memref<1x128xf32, #tpu.memory_space<vmem>>, vector<1x128xf32>
    %22 = vector.broadcast %21 : vector<1x128xf32> to vector<8x128xf32>
    %23 = arith.addf %20, %22 : vector<8x128xf32>
    %cst_14 = arith.constant 5.000000e-01 : f32
    %24 = vector.broadcast %cst_14 : f32 to vector<8x128xf32>
    %25 = arith.mulf %24, %23 : vector<8x128xf32>
    %cst_15 = arith.constant 4.471500e-02 : f32
    %26 = vector.broadcast %cst_15 : f32 to vector<8x128xf32>
    %27 = arith.mulf %26, %23 : vector<8x128xf32>
    %28 = arith.mulf %27, %23 : vector<8x128xf32>
    %29 = arith.mulf %28, %23 : vector<8x128xf32>
    %30 = arith.addf %23, %29 : vector<8x128xf32>
    %cst_16 = arith.constant 0.797884583 : f32
    %31 = vector.broadcast %cst_16 : f32 to vector<8x128xf32>
    %32 = arith.mulf %31, %30 : vector<8x128xf32>
    %33 = math.tanh %32 : vector<8x128xf32>
    %cst_17 = arith.constant 1.000000e+00 : f32
    %34 = vector.broadcast %cst_17 : f32 to vector<8x128xf32>
    %35 = arith.addf %34, %33 : vector<8x128xf32>
    %36 = arith.mulf %25, %35 : vector<8x128xf32>
    %c0_18 = arith.constant 0 : index
    %c0_19 = arith.constant 0 : index
    %37 = vector.load %arg6[%c0_18, %c0_19] : memref<128x2xf32, #tpu.memory_space<vmem>>, vector<128x2xf32>
    %cst_20 = arith.constant dense<0.000000e+00> : vector<8x2xf32>
    %38 = tpu.matmul %36, %37, %cst_20 {dimension_numbers = #tpu.dot_dimension_numbers<[1], [0], [0], [1], [0, 0, 1, 1], [], []>} : vector<8x128xf32>, vector<128x2xf32>, vector<8x2xf32> -> vector<8x2xf32>
    %c0_21 = arith.constant 0 : index
    %c0_22 = arith.constant 0 : index
    %39 = vector.load %arg7[%c0_21, %c0_22] : memref<1x2xf32, #tpu.memory_space<vmem>>, vector<1x2xf32>
    %40 = vector.broadcast %39 : vector<1x2xf32> to vector<8x2xf32>
    %41 = arith.addf %38, %40 : vector<8x2xf32>
    %c0_23 = arith.constant 0 : index
    %c0_24 = arith.constant 0 : index
    %42 = vector.load %arg8[%c0_23, %c0_24] : memref<8x2xf32, #tpu.memory_space<vmem>>, vector<8x2xf32>
    tpu.vector_store %arg8[%c0_23, %c0_24], %41 {strides = array<i32>} : memref<8x2xf32, #tpu.memory_space<vmem>>, vector<8x2xf32>,
    return
  }
  func.func @transform_0(%arg0: i32) -> (i32, i32) {
    %c0_i32 = arith.constant 0 : i32
    %c0_i32_0 = arith.constant 0 : i32
    return %arg0, %c0_i32 : i32, i32
  }
  func.func @transform_1(%arg0: i32) -> (i32, i32) {
    %c0_i32 = arith.constant 0 : i32
    %c0_i32_0 = arith.constant 0 : i32
    %c0_i32_1 = arith.constant 0 : i32
    return %c0_i32, %c0_i32_0 : i32, i32
  }
  func.func @transform_2(%arg0: i32) -> (i32, i32) {
    %c0_i32 = arith.constant 0 : i32
    %c0_i32_0 = arith.constant 0 : i32
    %c0_i32_1 = arith.constant 0 : i32
    return %c0_i32, %c0_i32_0 : i32, i32
  }
  func.func @transform_3(%arg0: i32) -> (i32, i32) {
    %c0_i32 = arith.constant 0 : i32
    %c0_i32_0 = arith.constant 0 : i32
    %c0_i32_1 = arith.constant 0 : i32
    return %c0_i32, %c0_i32_0 : i32, i32
  }
  func.func @transform_4(%arg0: i32) -> (i32, i32) {
    %c0_i32 = arith.constant 0 : i32
    %c0_i32_0 = arith.constant 0 : i32
    %c0_i32_1 = arith.constant 0 : i32
    return %c0_i32, %c0_i32_0 : i32, i32
  }
  func.func @transform_5(%arg0: i32) -> (i32, i32) {
    %c0_i32 = arith.constant 0 : i32
    %c0_i32_0 = arith.constant 0 : i32
    %c0_i32_1 = arith.constant 0 : i32
    return %c0_i32, %c0_i32_0 : i32, i32
  }
  func.func @transform_6(%arg0: i32) -> (i32, i32) {
    %c0_i32 = arith.constant 0 : i32
    %c0_i32_0 = arith.constant 0 : i32
    %c0_i32_1 = arith.constant 0 : i32
    return %c0_i32, %c0_i32_0 : i32, i32
  }
  func.func @transform_7(%arg0: i32) -> (i32, i32) {
    %c0_i32 = arith.constant 0 : i32
    %c0_i32_0 = arith.constant 0 : i32
    return %arg0, %c0_i32 : i32, i32
  }
}

</mosaic_0001>

<llo_original>
// kernel: tpu_custom_call.1
$region0: #{tpu_custom_call.1}
  #allocation0 [shape = 'u32[]', space=smem, size = 0x4, offset = 0x4, fixed_abs, tag = 'smem constant byte address 0x4 - core index']
  #allocation1 [shape = 'u32[144,128]{1,0:T(1,128)}', space=vmem, size = 0x12000, scoped, tag = 'internal scratch']
  %s0 = inlined_call_operand.vmem [shape: f32[8,4], index: 0, kind: input, shape index: {}]
  %s1 = inlined_call_operand.vmem [shape: f32[4,128], index: 1, kind: input, shape index: {}]
  %s2 = inlined_call_operand.vmem [shape: f32[1,128], index: 2, kind: input, shape index: {}]
  %s3 = inlined_call_operand.vmem [shape: f32[128,128], index: 3, kind: input, shape index: {}]
  %s4 = inlined_call_operand.vmem [shape: f32[1,128], index: 4, kind: input, shape index: {}]
  %s5 = inlined_call_operand.vmem [shape: f32[128,2], index: 5, kind: input, shape index: {}]
  %s6 = inlined_call_operand.vmem [shape: f32[1,2], index: 6, kind: input, shape index: {}]
  %s7 = inlined_call_operand.vmem [shape: f32[8,2], index: 7, kind: output, shape index: {}]
  %s8 = sld [smem:[#allocation0]]
  $region38: #{tpu_custom_call.1} parent=0
    _
  %s10 = ssub.s32 1, %s8
  %s11 = scalar_select 0, %s10, %s8
  // Predicated region
  $region2: #{tpu_custom_call.1} parent=0 // pred_check
    _
  $region3: #{tpu_custom_call.1} parent=0 // pred_check_branch
    %13 = sbr.rel (0) target = $region5
  $region4: #{tpu_custom_call.1} parent=0 // pred_region
    _
  $region5: #{tpu_custom_call.1} parent=0 // pred_fallthru
    _
  // Predicated region
  $region6: #{tpu_custom_call.1} parent=0 // pred_check
    _
  $region7: #{tpu_custom_call.1} parent=0 // pred_check_branch
    %15 = sbr.rel (0) target = $region9
  $region8: #{tpu_custom_call.1} parent=0 // pred_region
    _
  $region9: #{tpu_custom_call.1} parent=0 // pred_fallthru
    _
  // Predicated region
  $region10: #{tpu_custom_call.1} parent=0 // pred_check
    _
  $region11: #{tpu_custom_call.1} parent=0 // pred_check_branch
    %17 = sbr.rel (0) target = $region13
  $region12: #{tpu_custom_call.1} parent=0 // pred_region
    _
  $region13: #{tpu_custom_call.1} parent=0 // pred_fallthru
    _
  // Predicated region
  $region14: #{tpu_custom_call.1} parent=0 // pred_check
    _
  $region15: #{tpu_custom_call.1} parent=0 // pred_check_branch
    %19 = sbr.rel (0) target = $region17
  $region16: #{tpu_custom_call.1} parent=0 // pred_region
    _
  $region17: #{tpu_custom_call.1} parent=0 // pred_fallthru
    _
  // Predicated region
  $region18: #{tpu_custom_call.1} parent=0 // pred_check
    _
  $region19: #{tpu_custom_call.1} parent=0 // pred_check_branch
    %21 = sbr.rel (0) target = $region21
  $region20: #{tpu_custom_call.1} parent=0 // pred_region
    _
  $region21: #{tpu_custom_call.1} parent=0 // pred_fallthru
    _
  // Predicated region
  $region22: #{tpu_custom_call.1} parent=0 // pred_check
    _
  $region23: #{tpu_custom_call.1} parent=0 // pred_check_branch
    %23 = sbr.rel (0) target = $region25
  $region24: #{tpu_custom_call.1} parent=0 // pred_region
    _
  $region25: #{tpu_custom_call.1} parent=0 // pred_fallthru
    _
  // Predicated region
  $region26: #{tpu_custom_call.1} parent=0 // pred_check
    _
  $region27: #{tpu_custom_call.1} parent=0 // pred_check_branch
    %25 = sbr.rel (0) target = $region29
  $region28: #{tpu_custom_call.1} parent=0 // pred_region
    _
  $region29: #{tpu_custom_call.1} parent=0 // pred_fallthru
    _
  %v26 = vld [vmem:[%s0] sm:$0xff]
  %v27 = vld [vmem:[%s1] sm:$0xf]
  %v28 = vld [vmem:[%s2] sm:$0x1]
  %v30 = vlaneseq
  %v31 = vshrl.u32 %v30, 7
  %v32 = vsub.s32 0, %v31
  %v33 = vrot.slane %v28, %v32
  %vm35 = vcmask 31744
  %v37 = vsel %vm35, %v26, 0
  %vm39 = vcmask 1043456
  %v41 = vsel %vm39, %v27, 0
  %43 = vmatprep.subr.mxu0 0.0
  %44 = vmatpush1.msra.mxu0 0.0
  %45 = vmatprep.subr.mxu0 0.0
  %46 = vmatpush1.msra.mxu0 0.0
  %47 = vmatprep.subr.mxu0 0.0
  %48 = vmatpush1.msra.mxu0 0.0
  %49 = vmatprep.subr.mxu0 0.0
  %50 = vmatpush1.msra.mxu0 0.0
  %51 = vmatprep.subr.mxu0 0.0
  %52 = vmatpush1.msra.mxu0 0.0
  %53 = vmatprep.subr.mxu0 0.0
  %54 = vmatpush1.msra.mxu0 0.0
  %55 = vmatprep.subr.mxu0 0.0
  %56 = vmatpush1.msra.mxu0 0.0
  %57 = vmatprep.subr.mxu0 0.0
  %58 = vmatpush1.msra.mxu0 0.0
  %59 = vmatprep.subr.mxu0 0.0
  %60 = vmatpush1.msra.mxu0 0.0
  %61 = vmatprep.subr.mxu0 0.0
  %62 = vmatpush1.msra.mxu0 0.0
  %63 = vmatprep.subr.mxu0 0.0
  %64 = vmatpush1.msra.mxu0 0.0
  %65 = vmatprep.subr.mxu0 0.0
  %66 = vmatpush1.msra.mxu0 0.0
  %67 = vmatprep.subr.mxu0 0.0
  %68 = vmatpush1.msra.mxu0 0.0
  %69 = vmatprep.subr.mxu0 0.0
  %70 = vmatpush1.msra.mxu0 0.0
  %71 = vmatprep.subr.mxu0 0.0
  %72 = vmatpush1.msra.mxu0 0.0
  %73 = vmatprep.subr.mxu0 0.0
  %74 = vmatpush1.msra.mxu0 %v41
  %75 = vmatprep.subr.mxu0 0.0
  %76 = vmatpush2.msra.mxu0 0.0
  %77 = vmatprep.subr.mxu0 0.0
  %78 = vmatpush2.msra.mxu0 0.0
  %79 = vmatprep.subr.mxu0 0.0
  %80 = vmatpush2.msra.mxu0 0.0
  %81 = vmatprep.subr.mxu0 0.0
  %82 = vmatpush2.msra.mxu0 0.0
  %83 = vmatprep.subr.mxu0 0.0
  %84 = vmatpush2.msra.mxu0 0.0
  %85 = vmatprep.subr.mxu0 0.0
  %86 = vmatpush2.msra.mxu0 0.0
  %87 = vmatprep.subr.mxu0 0.0
  %88 = vmatpush2.msra.mxu0 0.0
  %89 = vmatprep.subr.mxu0 0.0
  %90 = vmatpush2.msra.mxu0 0.0
  %91 = vmatprep.subr.mxu0 0.0
  %92 = vmatpush2.msra.mxu0 0.0
  %93 = vmatprep.subr.mxu0 0.0
  %94 = vmatpush2.msra.mxu0 0.0
  %95 = vmatprep.subr.mxu0 0.0
  %96 = vmatpush2.msra.mxu0 0.0
  %97 = vmatprep.subr.mxu0 0.0
  %98 = vmatpush2.msra.mxu0 0.0
  %99 = vmatprep.subr.mxu0 0.0
  %100 = vmatpush2.msra.mxu0 0.0
  %101 = vmatprep.subr.mxu0 0.0
  %102 = vmatpush2.msra.mxu0 0.0
  %103 = vmatprep.subr.mxu0 0.0
  %104 = vmatpush2.msra.mxu0 0.0
  %105 = vmatprep.subr.mxu0 0.0
  %106 = vmatpush2.msra.mxu0 0.0
  %107 = vmatprep.mubr.f32.mxu0 0.0
  %108 = vmatmul.mubr.f32.gmra.mxu0 %v37
  %v109 = vpop.f32.mrf.mxu0
  %v110 = vadd.f32 %v33, %v109
  %v111 = vpop.f32.mrf.mxu0
  %112 = vdwg.mxu0
  %v113 = vmul.f32 %v110, 0.5
  %v114 = vmul.f32 %v110, 0.044715
  %v115 = vmul.f32 %v114, %v110
  %v116 = vmul.f32 %v115, %v110
  %v117 = vadd.f32 %v110, %v116
  %v118 = vmul.f32 %v117, 0.7978846
  %v119 = vtanh.pop %v118
  %v120 = vadd.f32 %v119, 1.0
  %v121 = vmul.f32 %v113, %v120
  %v122 = vld [vmem:[%s3] sm:$0xff]
  %v123 = vld [vmem:[%s3 + $0x8] sm:$0xff]
  %v124 = vld [vmem:[%s3 + $0x10] sm:$0xff]
  %v125 = vld [vmem:[%s3 + $0x18] sm:$0xff]
  %v126 = vld [vmem:[%s3 + $0x20] sm:$0xff]
  %v127 = vld [vmem:[%s3 + $0x28] sm:$0xff]
  %v128 = vld [vmem:[%s3 + $0x30] sm:$0xff]
  %v129 = vld [vmem:[%s3 + $0x38] sm:$0xff]
  %v130 = vld [vmem:[%s3 + $0x40] sm:$0xff]
  %v131 = vld [vmem:[%s3 + $0x48] sm:$0xff]
  %v132 = vld [vmem:[%s3 + $0x50] sm:$0xff]
  %v133 = vld [vmem:[%s3 + $0x58] sm:$0xff]
  %v134 = vld [vmem:[%s3 + $0x60] sm:$0xff]
  %v135 = vld [vmem:[%s3 + $0x68] sm:$0xff]
  %v136 = vld [vmem:[%s3 + $0x70] sm:$0xff]
  %v137 = vld [vmem:[%s3 + $0x78] sm:$0xff]
  %v138 = vld [vmem:[%s4] sm:$0x1]
  %v140 = vlaneseq
  %v141 = vshrl.u32 %v140, 7
  %v142 = vsub.s32 0, %v141
  %v143 = vrot.slane %v138, %v142
  %145 = vmatprep.subr.mxu0 0.0
  %146 = vmatpush1.msra.mxu0 %v137
  %147 = vmatprep.subr.mxu0 0.0
  %148 = vmatpush1.msra.mxu0 %v136
  %149 = vmatprep.subr.mxu0 0.0
  %150 = vmatpush1.msra.mxu0 %v135
  %151 = vmatprep.subr.mxu0 0.0
  %152 = vmatpush1.msra.mxu0 %v134
  %153 = vmatprep.subr.mxu0 0.0
  %154 = vmatpush1.msra.mxu0 %v133
  %155 = vmatprep.subr.mxu0 0.0
  %156 = vmatpush1.msra.mxu0 %v132
  %157 = vmatprep.subr.mxu0 0.0
  %158 = vmatpush1.msra.mxu0 %v131
  %159 = vmatprep.subr.mxu0 0.0
  %160 = vmatpush1.msra.mxu0 %v130
  %161 = vmatprep.subr.mxu0 0.0
  %162 = vmatpush1.msra.mxu0 %v129
  %163 = vmatprep.subr.mxu0 0.0
  %164 = vmatpush1.msra.mxu0 %v128
  %165 = vmatprep.subr.mxu0 0.0
  %166 = vmatpush1.msra.mxu0 %v127
  %167 = vmatprep.subr.mxu0 0.0
  %168 = vmatpush1.msra.mxu0 %v126
  %169 = vmatprep.subr.mxu0 0.0
  %170 = vmatpush1.msra.mxu0 %v125
  %171 = vmatprep.subr.mxu0 0.0
  %172 = vmatpush1.msra.mxu0 %v124
  %173 = vmatprep.subr.mxu0 0.0
  %174 = vmatpush1.msra.mxu0 %v123
  %175 = vmatprep.subr.mxu0 0.0
  %176 = vmatpush1.msra.mxu0 %v122
  %177 = vmatprep.subr.mxu0 0.0
  %178 = vmatpush2.msra.mxu0 0.0
  %179 = vmatprep.subr.mxu0 0.0
  %180 = vmatpush2.msra.mxu0 0.0
  %181 = vmatprep.subr.mxu0 0.0
  %182 = vmatpush2.msra.mxu0 0.0
  %183 = vmatprep.subr.mxu0 0.0
  %184 = vmatpush2.msra.mxu0 0.0
  %185 = vmatprep.subr.mxu0 0.0
  %186 = vmatpush2.msra.mxu0 0.0
  %187 = vmatprep.subr.mxu0 0.0
  %188 = vmatpush2.msra.mxu0 0.0
  %189 = vmatprep.subr.mxu0 0.0
  %190 = vmatpush2.msra.mxu0 0.0
  %191 = vmatprep.subr.mxu0 0.0
  %192 = vmatpush2.msra.mxu0 0.0
  %193 = vmatprep.subr.mxu0 0.0
  %194 = vmatpush2.msra.mxu0 0.0
  %195 = vmatprep.subr.mxu0 0.0
  %196 = vmatpush2.msra.mxu0 0.0
  %197 = vmatprep.subr.mxu0 0.0
  %198 = vmatpush2.msra.mxu0 0.0
  %199 = vmatprep.subr.mxu0 0.0
  %200 = vmatpush2.msra.mxu0 0.0
  %201 = vmatprep.subr.mxu0 0.0
  %202 = vmatpush2.msra.mxu0 0.0
  %203 = vmatprep.subr.mxu0 0.0
  %204 = vmatpush2.msra.mxu0 0.0
  %205 = vmatprep.subr.mxu0 0.0
  %206 = vmatpush2.msra.mxu0 0.0
  %207 = vmatprep.subr.mxu0 0.0
  %208 = vmatpush2.msra.mxu0 0.0
  %209 = vmatprep.mubr.f32.mxu0 0.0
  %210 = vmatmul.mubr.f32.gmra.mxu0 %v121
  %v211 = vpop.f32.mrf.mxu0
  %v212 = vadd.f32 %v143, %v211
  %v213 = vpop.f32.mrf.mxu0
  %214 = vdwg.mxu0
  %v215 = vmul.f32 %v212, 0.5
  %v216 = vmul.f32 %v212, 0.044715
  %v217 = vmul.f32 %v216, %v212
  %v218 = vmul.f32 %v217, %v212
  %v219 = vadd.f32 %v212, %v218
  %v220 = vmul.f32 %v219, 0.7978846
  %v221 = vtanh.pop %v220
  %v222 = vadd.f32 %v221, 1.0
  %v223 = vmul.f32 %v215, %v222
  %v224 = vld [vmem:[%s5] sm:$0xff]
  %v225 = vld [vmem:[%s5 + $0x8] sm:$0xff]
  %v226 = vld [vmem:[%s5 + $0x10] sm:$0xff]
  %v227 = vld [vmem:[%s5 + $0x18] sm:$0xff]
  %v228 = vld [vmem:[%s5 + $0x20] sm:$0xff]
  %v229 = vld [vmem:[%s5 + $0x28] sm:$0xff]
  %v230 = vld [vmem:[%s5 + $0x30] sm:$0xff]
  %v231 = vld [vmem:[%s5 + $0x38] sm:$0xff]
  %v232 = vld [vmem:[%s5 + $0x40] sm:$0xff]
  %v233 = vld [vmem:[%s5 + $0x48] sm:$0xff]
  %v234 = vld [vmem:[%s5 + $0x50] sm:$0xff]
  %v235 = vld [vmem:[%s5 + $0x58] sm:$0xff]
  %v236 = vld [vmem:[%s5 + $0x60] sm:$0xff]
  %v237 = vld [vmem:[%s5 + $0x68] sm:$0xff]
  %v238 = vld [vmem:[%s5 + $0x70] sm:$0xff]
  %v239 = vld [vmem:[%s5 + $0x78] sm:$0xff]
  %v240 = vld [vmem:[%s6] sm:$0x1]
  %v242 = vlaneseq
  %v243 = vshrl.u32 %v242, 7
  %v244 = vsub.s32 0, %v243
  %v245 = vrot.slane %v240, %v244
  %247 = vmatprep.subr.mxu0 0.0
  %248 = vmatpush1.msra.mxu0 %v239
  %249 = vmatprep.subr.mxu0 0.0
  %250 = vmatpush1.msra.mxu0 %v238
  %251 = vmatprep.subr.mxu0 0.0
  %252 = vmatpush1.msra.mxu0 %v237
  %253 = vmatprep.subr.mxu0 0.0
  %254 = vmatpush1.msra.mxu0 %v236
  %255 = vmatprep.subr.mxu0 0.0
  %256 = vmatpush1.msra.mxu0 %v235
  %257 = vmatprep.subr.mxu0 0.0
  %258 = vmatpush1.msra.mxu0 %v234
  %259 = vmatprep.subr.mxu0 0.0
  %260 = vmatpush1.msra.mxu0 %v233
  %261 = vmatprep.subr.mxu0 0.0
  %262 = vmatpush1.msra.mxu0 %v232
  %263 = vmatprep.subr.mxu0 0.0
  %264 = vmatpush1.msra.mxu0 %v231
  %265 = vmatprep.subr.mxu0 0.0
  %266 = vmatpush1.msra.mxu0 %v230
  %267 = vmatprep.subr.mxu0 0.0
  %268 = vmatpush1.msra.mxu0 %v229
  %269 = vmatprep.subr.mxu0 0.0
  %270 = vmatpush1.msra.mxu0 %v228
  %271 = vmatprep.subr.mxu0 0.0
  %272 = vmatpush1.msra.mxu0 %v227
  %273 = vmatprep.subr.mxu0 0.0
  %274 = vmatpush1.msra.mxu0 %v226
  %275 = vmatprep.subr.mxu0 0.0
  %276 = vmatpush1.msra.mxu0 %v225
  %277 = vmatprep.subr.mxu0 0.0
  %278 = vmatpush1.msra.mxu0 %v224
  %279 = vmatprep.subr.mxu0 0.0
  %280 = vmatpush2.msra.mxu0 0.0
  %281 = vmatprep.subr.mxu0 0.0
  %282 = vmatpush2.msra.mxu0 0.0
  %283 = vmatprep.subr.mxu0 0.0
  %284 = vmatpush2.msra.mxu0 0.0
  %285 = vmatprep.subr.mxu0 0.0
  %286 = vmatpush2.msra.mxu0 0.0
  %287 = vmatprep.subr.mxu0 0.0
  %288 = vmatpush2.msra.mxu0 0.0
  %289 = vmatprep.subr.mxu0 0.0
  %290 = vmatpush2.msra.mxu0 0.0
  %291 = vmatprep.subr.mxu0 0.0
  %292 = vmatpush2.msra.mxu0 0.0
  %293 = vmatprep.subr.mxu0 0.0
  %294 = vmatpush2.msra.mxu0 0.0
  %295 = vmatprep.subr.mxu0 0.0
  %296 = vmatpush2.msra.mxu0 0.0
  %297 = vmatprep.subr.mxu0 0.0
  %298 = vmatpush2.msra.mxu0 0.0
  %299 = vmatprep.subr.mxu0 0.0
  %300 = vmatpush2.msra.mxu0 0.0
  %301 = vmatprep.subr.mxu0 0.0
  %302 = vmatpush2.msra.mxu0 0.0
  %303 = vmatprep.subr.mxu0 0.0
  %304 = vmatpush2.msra.mxu0 0.0
  %305 = vmatprep.subr.mxu0 0.0
  %306 = vmatpush2.msra.mxu0 0.0
  %307 = vmatprep.subr.mxu0 0.0
  %308 = vmatpush2.msra.mxu0 0.0
  %309 = vmatprep.subr.mxu0 0.0
  %310 = vmatpush2.msra.mxu0 0.0
  %311 = vmatprep.mubr.f32.mxu0 0.0
  %312 = vmatmul.mubr.f32.gmra.mxu0 %v223
  %v313 = vpop.f32.mrf.mxu0
  %v314 = vadd.f32 %v245, %v313
  %v315 = vpop.f32.mrf.mxu0
  %316 = vdwg.mxu0
  %vm317 = vcmask 15360
  %318 = vst.msk [vmem:[%s7] sm:$0xff] %vm317, %v314
  // Predicated region
  $region30: #{tpu_custom_call.1} parent=0 // pred_check
    _
  $region31: #{tpu_custom_call.1} parent=0 // pred_check_branch
    %320 = sbr.rel (0) target = $region33
  $region32: #{tpu_custom_call.1} parent=0 // pred_region
    _
  $region33: #{tpu_custom_call.1} parent=0 // pred_fallthru
    _
  // Predicated region
  $region34: #{tpu_custom_call.1} parent=0 // pred_check
    _
  $region35: #{tpu_custom_call.1} parent=0 // pred_check_branch
    %322 = sbr.rel (0) target = $region37
  $region36: #{tpu_custom_call.1} parent=0 // pred_region
    _
  $region37: #{tpu_custom_call.1} parent=0 // pred_fallthru
    _

</llo_original>
